<compile_context>
chip_gen: v5e
topology: v5e:2x2
jax: 0.10.0
libtpu: 0.0.40
codegen_flags: <defaults>
</compile_context>

<pallas_src>
import jax
import jax.numpy as jnp
from jax.experimental import pallas as pl
from jax.experimental.pallas import tpu as pltpu


def _tanh_kernel(x_ref, o_ref):
    # Elementwise hot path: EUP tanh over the whole VMEM tile (co-issues with
    # the vld/vst stream, so the kernel stays HBM-bandwidth-bound).
    o_ref[...] = jnp.tanh(x_ref[...])


_WIDTH_CANDIDATES = (8192, 4096, 2048, 1024, 512, 256, 128)


def _vmem_capacity_bytes() -> int:
    """Physical VMEM per TensorCore; conservative fallback if query fails."""
    try:
        info = pltpu.get_tpu_info()
        cap = getattr(info, "vmem_capacity_bytes", None)
        if cap:
            return int(cap)
    except Exception:
        pass
    return 64 * 1024 * 1024  # v7x per-TC size = smallest across generations


def _pick_width(n: int, sub: int, candidates, max_width_elems: int):
    """Widest lane-dense width dividing n, preferring rows = n//width >= sub."""
    best_div = None
    for c in candidates:
        if c > max_width_elems or n % c != 0:
            continue
        if best_div is None:
            best_div = c  # widest exact divisor (fallback, rows may be < sub)
        if n // c >= sub:
            return c      # widest divisor that still fills the sublanes
    return best_div


def tanh_pallas(x: jax.Array) -> jax.Array:
    """Elementwise tanh via a Pallas TPU kernel. Matches torch.nn.Tanh()."""
    orig_shape = x.shape
    dtype = x.dtype
    n = x.size
    if n == 0:
        return x

    itemsize = jnp.dtype(dtype).itemsize
    # Sublane packing factor: 8 for 32-bit, 16 for bf16/f16, 32 for 8-bit.
    sub = max(8, 32 // max(itemsize, 1))

    # Generation-aware block budget: ~1/16 of physical VMEM, clamped to
    # [2 MiB, 8 MiB] -> 8 MiB blocks on v5e/v6e (128 MiB), 4 MiB on v7x (64).
    vmem_cap = _vmem_capacity_bytes()
    block_bytes = min(8 << 20, max(2 << 20, vmem_cap // 16))
    # 2 input + 2 output double-buffered blocks plus headroom, requested
    # explicitly; stays <= half of physical VMEM on every generation.
    vmem_limit = int(min(max(4 * block_bytes + (4 << 20), 32 << 20), vmem_cap // 2))

    candidates = list(_WIDTH_CANDIDATES)
    if x.ndim >= 2:
        last = int(x.shape[-1])
        if last % 128 == 0 and last not in candidates:
            candidates.append(last)  # keep a lane-aligned native last dim
    candidates.sort(reverse=True)
    max_width_elems = block_bytes // (sub * itemsize)

    width = _pick_width(n, sub, candidates, max_width_elems)
    if width is None:
        # Ragged element count: a fused XLA tanh is one HBM streaming pass,
        # strictly cheaper than pad -> pallas -> slice (~3 passes).
        return jnp.tanh(x)

    rows = n // width
    x2d = jnp.ravel(x).reshape(rows, width)

    # Rows per block: fill the block budget, rounded to the sublane packing.
    tile_rows = block_bytes // (width * itemsize)
    tile_rows = max(sub, (tile_rows // sub) * sub)
    tile_rows = min(tile_rows, rows)
    # Megacore (v7x): force >= 2 grid blocks whenever the row extent allows,
    # so the "parallel" axis is sharded across both TensorCores instead of
    # collapsing mid-size inputs to a single block on one core.
    if rows >= 2 * sub:
        tile_rows = min(tile_rows, sub * pl.cdiv(pl.cdiv(rows, 2), sub))
    # tile_rows is either a multiple of `sub` (>= 8) or the full row extent,
    # so the (8, 128) block constraint holds; ragged final blocks are handled
    # by Pallas edge masking via the pl.cdiv grid.

    grid = (pl.cdiv(rows, tile_rows),)

    y2d = pl.pallas_call(
        _tanh_kernel,
        out_shape=jax.ShapeDtypeStruct((rows, width), dtype),
        grid_spec=pltpu.PrefetchScalarGridSpec(
            num_scalar_prefetch=0,
            grid=grid,
            in_specs=[pl.BlockSpec((tile_rows, width), lambda i: (i, 0))],
            out_specs=pl.BlockSpec((tile_rows, width), lambda i: (i, 0)),
        ),
        compiler_params=pltpu.CompilerParams(
            dimension_semantics=("parallel",),  # independent blocks
            vmem_limit_bytes=vmem_limit,
        ),
    )(x2d)

    return y2d.reshape(orig_shape)


if __name__ == "__main__":
    key = jax.random.PRNGKey(0)
    k0, k1, k2, k3 = jax.random.split(key, 4)

    # Small NCHW input consistent with a conv-style activation.
    x = jax.random.normal(k0, (2, 4, 16, 16), dtype=jnp.float32)
    y = tanh_pallas(x)
    jax.block_until_ready(y)
    assert y.shape == x.shape and y.dtype == x.dtype
    assert jnp.allclose(y, jnp.tanh(x), atol=1e-6, rtol=1e-6)

    # Moderate input: exercises the multi-block (megacore-friendly) path.
    x_big = jax.random.normal(k1, (8, 128, 128), dtype=jnp.float32)
    y_big = tanh_pallas(x_big)
    jax.block_until_ready(y_big)
    assert jnp.allclose(y_big, jnp.tanh(x_big), atol=1e-6, rtol=1e-6)

    # Ragged element count (fused XLA fallback path, no pad/slice passes).
    x_ragged = jax.random.normal(k2, (3, 5, 7), dtype=jnp.float32)
    y_ragged = tanh_pallas(x_ragged)
    jax.block_until_ready(y_ragged)
    assert jnp.allclose(y_ragged, jnp.tanh(x_ragged), atol=1e-6, rtol=1e-6)

    # bf16 (exercises dtype-aware sublane rounding / full-extent block).
    x_bf16 = jax.random.normal(k3, (4, 8, 32), dtype=jnp.bfloat16)
    y_bf16 = tanh_pallas(x_bf16)
    jax.block_until_ready(y_bf16)
    assert y_bf16.dtype == jnp.bfloat16
    assert jnp.allclose(
        y_bf16.astype(jnp.float32),
        jnp.tanh(x_bf16).astype(jnp.float32),
        atol=2e-2,
        rtol=2e-2,
    )

    print("KERNEL_OK")
</pallas_src>

<mosaic_0001>
module attributes {stable_mosaic.version = 11 : i64} {
  func.func @_tanh_kernel(%arg0: i32, %arg1: memref<8x256xf32, #tpu.memory_space<vmem>>, %arg2: memref<8x256xf32, #tpu.memory_space<vmem>>) attributes {dimension_semantics = [#tpu.dimension_semantics<parallel>], iteration_bounds = array<i64: 1>, scalar_prefetch = 0 : i64, scratch_operands = 0 : i64, tpu.core_type = #tpu.core_type<tc>, window_params = [{transform_indices = @transform_0, window_bounds = array<i64: 8, 256>}, {transform_indices = @transform_1, window_bounds = array<i64: 8, 256>}]} {
    %c0 = arith.constant 0 : index
    %c0_0 = arith.constant 0 : index
    %0 = vector.load %arg1[%c0, %c0_0] : memref<8x256xf32, #tpu.memory_space<vmem>>, vector<8x256xf32>
    %1 = math.tanh %0 : vector<8x256xf32>
    %c0_1 = arith.constant 0 : index
    %c0_2 = arith.constant 0 : index
    %2 = vector.load %arg2[%c0_1, %c0_2] : memref<8x256xf32, #tpu.memory_space<vmem>>, vector<8x256xf32>
    tpu.vector_store %arg2[%c0_1, %c0_2], %1 {strides = array<i32>} : memref<8x256xf32, #tpu.memory_space<vmem>>, vector<8x256xf32>,
    return
  }
  func.func @transform_0(%arg0: i32) -> (i32, i32) {
    %c0_i32 = arith.constant 0 : i32
    %c0_i32_0 = arith.constant 0 : i32
    return %arg0, %c0_i32 : i32, i32
  }
  func.func @transform_1(%arg0: i32) -> (i32, i32) {
    %c0_i32 = arith.constant 0 : i32
    %c0_i32_0 = arith.constant 0 : i32
    return %arg0, %c0_i32 : i32, i32
  }
}

</mosaic_0001>

<llo_original>
// kernel: tpu_custom_call.1
$region0: #{tpu_custom_call.1}
  #allocation0 [shape = 'u32[]', space=smem, size = 0x4, offset = 0x4, fixed_abs, tag = 'smem constant byte address 0x4 - core index']
  #allocation1 [shape = 'u32[72,128]{1,0:T(1,128)}', space=vmem, size = 0x9000, scoped, tag = 'internal scratch']
  %s0 = inlined_call_operand.hbm [shape: f32[8,256], index: 0, kind: input, shape index: {}]
  %s1 = inlined_call_operand.hbm [shape: f32[8,256], index: 1, kind: output, shape index: {}]
  %s2 = sld [smem:[#allocation0]]
  $region18: #{tpu_custom_call.1} parent=0
    _
  %s4 = ssub.s32 1, %s2
  %s5 = scalar_select 0, %s4, %s2
  $region1: #{tpu_custom_call.1} parent=0
    #allocation2 [shape = 'u8[8192]{0}', space=vmem, size = 0x2000, scoped, tag = 'input window, operand 0, single buffered']
    #allocation3 [shape = 's32[1]{0}', space=sflag, size = 0x4, scoped, tag = 'scoped memory for tpu_custom_call.1']
    #allocation4 [shape = 's32[1]{0}', space=sflag, size = 0x4, scoped, tag = 'scoped memory for tpu_custom_call.1']
    #allocation5 [shape = 'u8[8192]{0}', space=vmem, size = 0x2000, scoped, tag = 'output window, operand 0, single buffered']
    %6 = vsyncpa [#allocation3], 0
    %7 = vsyncpa [#allocation4], 0
    // Predicated region
    $region2: #{tpu_custom_call.1} parent=1 // pred_check
      _
    $region3: #{tpu_custom_call.1} parent=1 // pred_check_branch
      %9 = sbr.rel (0) target = $region5
    $region4: #{tpu_custom_call.1} parent=1 // pred_region
      %11 = vsyncadd [#allocation3], 0
      %s13 = sshll.u32 %s0, 4
      %s14 = int_to_ptr.hbm [resolvable:$true] %s13
      %s15 = sshll.u32 [#allocation2], 4
      %s16 = int_to_ptr.vmem [resolvable:$true] %s15
      %18 = dma.hbm_to_vmem [thread:$0]  %s14, 256, %s16, [#allocation3]
    $region5: #{tpu_custom_call.1} parent=1 // pred_fallthru
      _
    // Predicated region
    $region6: #{tpu_custom_call.1} parent=1 // pred_check
      _
    $region7: #{tpu_custom_call.1} parent=1 // pred_check_branch
      %20 = sbr.rel (0) target = $region9
    $region8: #{tpu_custom_call.1} parent=1 // pred_region
      %22 = dma.done [#allocation3], 256
    $region9: #{tpu_custom_call.1} parent=1 // pred_fallthru
      _
    %v23 = vld [vmem:[#allocation2] sm:$0xff]
    %v24 = vld [vmem:[#allocation2 + $0x8] sm:$0xff]
    %v25 = vtanh.pop %v23
    %v26 = vtanh.pop %v24
    %27 = vst [vmem:[#allocation5] sm:$0xff] %v25
    %28 = vst [vmem:[#allocation5 + $0x8] sm:$0xff] %v26
    // Predicated region
    $region10: #{tpu_custom_call.1} parent=1 // pred_check
      _
    $region11: #{tpu_custom_call.1} parent=1 // pred_check_branch
      %30 = sbr.rel (0) target = $region13
    $region12: #{tpu_custom_call.1} parent=1 // pred_region
      %32 = vsyncadd [#allocation4], 0
      %s34 = sshll.u32 [#allocation5], 4
      %s35 = int_to_ptr.vmem [resolvable:$true] %s34
      %s36 = sshll.u32 %s1, 4
      %s37 = int_to_ptr.hbm [resolvable:$true] %s36
      %39 = dma.vmem_to_hbm [thread:$0]  %s35, 256, %s37, [#allocation4]
    $region13: #{tpu_custom_call.1} parent=1 // pred_fallthru
      _
    // Predicated region
    $region14: #{tpu_custom_call.1} parent=1 // pred_check
      _
    $region15: #{tpu_custom_call.1} parent=1 // pred_check_branch
      %41 = sbr.rel (0) target = $region17
    $region16: #{tpu_custom_call.1} parent=1 // pred_region
      %43 = dma.done [#allocation4], 256
    $region17: #{tpu_custom_call.1} parent=1 // pred_fallthru
      _
    %44 = vsyncpa [#allocation3], 1
    %45 = vsyncpa [#allocation4], 1

</llo_original>
